<compile_context>
chip_gen: v5e
topology: v5e:2x2
jax: 0.10.0
libtpu: 0.0.40
codegen_flags: <defaults>
</compile_context>

<pallas_src>
import jax
import jax.numpy as jnp
from jax.experimental import pallas as pl
from jax.experimental.pallas import tpu as pltpu

LANES = 128


def _h_sigmoid_kernel(x_ref, o_ref):
    x = x_ref[...]
    cdt = x.dtype if jnp.issubdtype(x.dtype, jnp.floating) else jnp.float32
    x = x.astype(cdt)
    three = jnp.asarray(3, dtype=cdt)
    six = jnp.asarray(6, dtype=cdt)
    zero = jnp.asarray(0, dtype=cdt)
    inv6 = jnp.asarray(1.0 / 6.0, dtype=cdt)
    # relu6(x + 3) * (1/6)
    y = jnp.minimum(jnp.maximum(x + three, zero), six) * inv6
    o_ref[...] = y.astype(o_ref.dtype)


def _h_sigmoid_jnp(x):
    cdt = x.dtype if jnp.issubdtype(x.dtype, jnp.floating) else jnp.float32
    xf = x.astype(cdt)
    y = jnp.minimum(jnp.maximum(xf + jnp.asarray(3, cdt), jnp.asarray(0, cdt)),
                    jnp.asarray(6, cdt)) * jnp.asarray(1.0 / 6.0, cdt)
    return y.astype(x.dtype)


def _sublane_multiple(dtype):
    size = jnp.dtype(dtype).itemsize
    if size >= 4:
        return 8
    if size == 2:
        return 16
    return 32


def _tpu_vmem_and_cores():
    """Best-effort VMEM capacity and TensorCore count of the local chip."""
    vmem_cap = 64 * 1024 * 1024
    n_cores = 1
    try:
        info = pltpu.get_tpu_info()
        vmem_cap = int(getattr(info, "vmem_capacity_bytes", vmem_cap))
        for attr in ("num_cores", "core_count", "num_tensorcores",
                     "tensorcores_per_chip", "cores_per_chip"):
            v = getattr(info, attr, None)
            if v:
                n_cores = max(n_cores, int(v))
                break
    except Exception:
        pass
    try:
        kind = jax.devices()[0].device_kind.lower()
        if "v7" in kind or "7x" in kind:
            n_cores = max(n_cores, 2)  # v7x: 2 TensorCores per chip
    except Exception:
        pass
    return vmem_cap, n_cores


def _choose_width(bulk, sub):
    """Widest lane-dense last dim (multiple of 128) that divides the bulk."""
    for w in (1024, 512, 256, 128):
        if bulk % w == 0 and (bulk // w) >= sub:
            return w
    return None


def _pick_tile(rows, width, itemsize, sub, n_cores, vmem_cap):
    """Rows-per-block + VMEM limit: 2-4 MiB blocks, >= 4 grid steps per core."""
    target_block_bytes = min(4 * 1024 * 1024,
                             max(1 * 1024 * 1024, vmem_cap // 32))
    tr = target_block_bytes // (width * itemsize)
    tr = max(sub, (tr // sub) * sub)
    # Keep the pipeline deep enough to hide first-fetch / last-writeback and
    # to balance the masked partial block (and both cores on v7x).
    min_steps = 4 * max(1, n_cores)
    per_step = -(-rows // min_steps)                  # ceil
    per_step = max(sub, -(-per_step // sub) * sub)    # round up to sublane mult
    tr = min(tr, per_step)
    block_bytes = tr * width * itemsize
    # Input Buffered(3) + output Buffered(2) live blocks + headroom.
    vmem_limit = int(min(vmem_cap,
                         max(32 * 1024 * 1024,
                             5 * block_bytes + 8 * 1024 * 1024)))
    return tr, vmem_limit


def _pallas_bulk(x2d, *, tr, vmem_limit, core_parallel, deep_input):
    rows, width = x2d.shape
    itemsize = jnp.dtype(x2d.dtype).itemsize
    if deep_input:
        in_spec = pl.BlockSpec((tr, width), lambda i: (i, 0),
                               pipeline_mode=pl.Buffered(3))
    else:
        in_spec = pl.BlockSpec((tr, width), lambda i: (i, 0))
    out_spec = pl.BlockSpec((tr, width), lambda i: (i, 0))
    semantics = (pltpu.CORE_PARALLEL,) if core_parallel else ("parallel",)
    out = pl.pallas_call(
        _h_sigmoid_kernel,
        out_shape=jax.ShapeDtypeStruct((rows, width), x2d.dtype),
        grid_spec=pltpu.PrefetchScalarGridSpec(
            num_scalar_prefetch=0,
            grid=(pl.cdiv(rows, tr),),
            in_specs=[in_spec],
            out_specs=out_spec,
        ),
        compiler_params=pltpu.CompilerParams(
            dimension_semantics=semantics,
            vmem_limit_bytes=vmem_limit,
        ),
        cost_estimate=pl.CostEstimate(
            flops=4 * rows * width,
            transcendentals=0,
            bytes_accessed=2 * rows * width * itemsize,
        ),
    )(x2d)
    # Block here so unsupported-feature errors surface inside the caller's
    # try/except and the fallback configuration can be used.
    return jax.block_until_ready(out)


def h_sigmoid(x):
    """Elementwise hard-sigmoid: relu6(x + 3) / 6.  Any shape; float dtypes."""
    orig_shape = x.shape
    dtype = x.dtype
    total = int(x.size)
    itemsize = jnp.dtype(dtype).itemsize
    sub = _sublane_multiple(dtype)

    flat = jnp.reshape(x, (total,))
    bulk = (total // LANES) * LANES
    width = _choose_width(bulk, sub) if bulk else None
    if width is None:
        # Smaller than one minimum tile; a kernel launch is not worthwhile.
        return jnp.reshape(_h_sigmoid_jnp(flat), orig_shape)

    rows = bulk // width
    vmem_cap, n_cores = _tpu_vmem_and_cores()
    tr, vmem_limit = _pick_tile(rows, width, itemsize, sub, n_cores, vmem_cap)

    bulk_flat = flat if bulk == total else flat[:bulk]
    x2d = jnp.reshape(bulk_flat, (rows, width))

    # Most optimized config first (dual-TensorCore grid + deeper input
    # buffering); clean fallback to the plain, known-good configuration if a
    # feature is unavailable on this chip / JAX version.
    configs = []
    if n_cores >= 2:
        configs += [dict(core_parallel=True, deep_input=True),
                    dict(core_parallel=True, deep_input=False)]
    configs += [dict(core_parallel=False, deep_input=True),
                dict(core_parallel=False, deep_input=False)]

    out2d, last_err = None, None
    for cfg in configs:
        try:
            out2d = _pallas_bulk(x2d, tr=tr, vmem_limit=vmem_limit, **cfg)
            break
        except Exception as e:  # unsupported feature -> try the next config
            last_err = e
    if out2d is None:
        raise last_err

    out_bulk = jnp.reshape(out2d, (bulk,))
    if bulk == total:
        return jnp.reshape(out_bulk, orig_shape)
    # Rare ragged tail (< 128 elements, only when total % 128 != 0).
    # TODO(synk): fold into a masked in-kernel store if this case becomes hot.
    out_tail = _h_sigmoid_jnp(flat[bulk:])
    return jnp.reshape(jnp.concatenate([out_bulk, out_tail]), orig_shape)


if __name__ == "__main__":
    k1, k2 = jax.random.split(jax.random.PRNGKey(0))

    # NCHW, matching the PyTorch module's expected conv-style input.
    x = jax.random.normal(k1, (2, 4, 16, 16), dtype=jnp.float32) * 4.0
    y = jax.block_until_ready(h_sigmoid(x))
    y_ref = jnp.clip(x + 3.0, 0.0, 6.0) / 6.0
    assert y.shape == x.shape and y.dtype == x.dtype
    assert float(jnp.max(jnp.abs(y - y_ref))) < 1e-6

    # Non-divisible shape: exercises the masked partial row-block and the
    # sub-128-element tail path (per the correctness review).
    x2 = jax.random.normal(k2, (3, 5, 7, 11), dtype=jnp.float32) * 4.0
    y2 = jax.block_until_ready(h_sigmoid(x2))
    y2_ref = jnp.clip(x2 + 3.0, 0.0, 6.0) / 6.0
    assert y2.shape == x2.shape and y2.dtype == x2.dtype
    assert float(jnp.max(jnp.abs(y2 - y2_ref))) < 1e-6

    print("KERNEL_OK")
</pallas_src>

<mosaic_0001>
module attributes {stable_mosaic.version = 11 : i64} {
  func.func @_h_sigmoid_kernel(%arg0: i32, %arg1: memref<8x256xf32, #tpu.memory_space<vmem>>, %arg2: memref<8x256xf32, #tpu.memory_space<vmem>>) attributes {dimension_semantics = [#tpu.dimension_semantics<parallel>], iteration_bounds = array<i64: 1>, scalar_prefetch = 0 : i64, scratch_operands = 0 : i64, tpu.core_type = #tpu.core_type<tc>, window_params = [{transform_indices = @transform_0, window_bounds = array<i64: 8, 256>}, {transform_indices = @transform_1, window_bounds = array<i64: 8, 256>}]} {
    %c0 = arith.constant 0 : index
    %c0_0 = arith.constant 0 : index
    %0 = vector.load %arg1[%c0, %c0_0] : memref<8x256xf32, #tpu.memory_space<vmem>>, vector<8x256xf32>
    %cst = arith.constant 3.000000e+00 : f32
    %1 = vector.broadcast %cst : f32 to vector<8x256xf32>
    %2 = arith.addf %0, %1 : vector<8x256xf32>
    %cst_1 = arith.constant 0.000000e+00 : f32
    %3 = vector.broadcast %cst_1 : f32 to vector<8x256xf32>
    %4 = arith.maximumf %2, %3 : vector<8x256xf32>
    %cst_2 = arith.constant 6.000000e+00 : f32
    %5 = vector.broadcast %cst_2 : f32 to vector<8x256xf32>
    %6 = arith.minimumf %4, %5 : vector<8x256xf32>
    %cst_3 = arith.constant 0.166666672 : f32
    %7 = vector.broadcast %cst_3 : f32 to vector<8x256xf32>
    %8 = arith.mulf %6, %7 : vector<8x256xf32>
    %c0_4 = arith.constant 0 : index
    %c0_5 = arith.constant 0 : index
    %9 = vector.load %arg2[%c0_4, %c0_5] : memref<8x256xf32, #tpu.memory_space<vmem>>, vector<8x256xf32>
    tpu.vector_store %arg2[%c0_4, %c0_5], %8 {strides = array<i32>} : memref<8x256xf32, #tpu.memory_space<vmem>>, vector<8x256xf32>,
    return
  }
  func.func @transform_0(%arg0: i32) -> (i32, i32) {
    %c0_i32 = arith.constant 0 : i32
    %c0_i32_0 = arith.constant 0 : i32
    return %arg0, %c0_i32 : i32, i32
  }
  func.func @transform_1(%arg0: i32) -> (i32, i32) {
    %c0_i32 = arith.constant 0 : i32
    %c0_i32_0 = arith.constant 0 : i32
    return %arg0, %c0_i32 : i32, i32
  }
}

</mosaic_0001>

<llo_original>
// kernel: tpu_custom_call.1
$region0: #{tpu_custom_call.1}
  #allocation0 [shape = 'u32[]', space=smem, size = 0x4, offset = 0x4, fixed_abs, tag = 'smem constant byte address 0x4 - core index']
  #allocation1 [shape = 'u32[72,128]{1,0:T(1,128)}', space=vmem, size = 0x9000, scoped, tag = 'internal scratch']
  %s0 = inlined_call_operand.hbm [shape: f32[8,256], index: 0, kind: input, shape index: {}]
  %s1 = inlined_call_operand.hbm [shape: f32[8,256], index: 1, kind: output, shape index: {}]
  %s2 = sld [smem:[#allocation0]]
  $region18: #{tpu_custom_call.1} parent=0
    _
  %s4 = ssub.s32 1, %s2
  %s5 = scalar_select 0, %s4, %s2
  $region1: #{tpu_custom_call.1} parent=0
    #allocation2 [shape = 'u8[8192]{0}', space=vmem, size = 0x2000, scoped, tag = 'input window, operand 0, single buffered']
    #allocation3 [shape = 's32[1]{0}', space=sflag, size = 0x4, scoped, tag = 'scoped memory for tpu_custom_call.1']
    #allocation4 [shape = 's32[1]{0}', space=sflag, size = 0x4, scoped, tag = 'scoped memory for tpu_custom_call.1']
    #allocation5 [shape = 'u8[8192]{0}', space=vmem, size = 0x2000, scoped, tag = 'output window, operand 0, single buffered']
    %6 = vsyncpa [#allocation3], 0
    %7 = vsyncpa [#allocation4], 0
    // Predicated region
    $region2: #{tpu_custom_call.1} parent=1 // pred_check
      _
    $region3: #{tpu_custom_call.1} parent=1 // pred_check_branch
      %9 = sbr.rel (0) target = $region5
    $region4: #{tpu_custom_call.1} parent=1 // pred_region
      %11 = vsyncadd [#allocation3], 0
      %s13 = sshll.u32 %s0, 4
      %s14 = int_to_ptr.hbm [resolvable:$true] %s13
      %s15 = sshll.u32 [#allocation2], 4
      %s16 = int_to_ptr.vmem [resolvable:$true] %s15
      %18 = dma.hbm_to_vmem [thread:$0]  %s14, 256, %s16, [#allocation3]
    $region5: #{tpu_custom_call.1} parent=1 // pred_fallthru
      _
    // Predicated region
    $region6: #{tpu_custom_call.1} parent=1 // pred_check
      _
    $region7: #{tpu_custom_call.1} parent=1 // pred_check_branch
      %20 = sbr.rel (0) target = $region9
    $region8: #{tpu_custom_call.1} parent=1 // pred_region
      %22 = dma.done [#allocation3], 256
    $region9: #{tpu_custom_call.1} parent=1 // pred_fallthru
      _
    %v23 = vld [vmem:[#allocation2] sm:$0xff]
    %v24 = vld [vmem:[#allocation2 + $0x8] sm:$0xff]
    %v25 = vadd.f32 %v23, 3.0
    %v26 = vadd.f32 %v24, 3.0
    %v27 = vmax.f32 %v25, 0.0
    %v28 = vmax.f32 %v26, 0.0
    %v29 = vmin.f32 %v27, 6.0
    %v30 = vmin.f32 %v28, 6.0
    %v31 = vmul.f32 %v29, 0.16666667
    %v32 = vmul.f32 %v30, 0.16666667
    %33 = vst [vmem:[#allocation5] sm:$0xff] %v31
    %34 = vst [vmem:[#allocation5 + $0x8] sm:$0xff] %v32
    // Predicated region
    $region10: #{tpu_custom_call.1} parent=1 // pred_check
      _
    $region11: #{tpu_custom_call.1} parent=1 // pred_check_branch
      %36 = sbr.rel (0) target = $region13
    $region12: #{tpu_custom_call.1} parent=1 // pred_region
      %38 = vsyncadd [#allocation4], 0
      %s40 = sshll.u32 [#allocation5], 4
      %s41 = int_to_ptr.vmem [resolvable:$true] %s40
      %s42 = sshll.u32 %s1, 4
      %s43 = int_to_ptr.hbm [resolvable:$true] %s42
      %45 = dma.vmem_to_hbm [thread:$0]  %s41, 256, %s43, [#allocation4]
    $region13: #{tpu_custom_call.1} parent=1 // pred_fallthru
      _
    // Predicated region
    $region14: #{tpu_custom_call.1} parent=1 // pred_check
      _
    $region15: #{tpu_custom_call.1} parent=1 // pred_check_branch
      %47 = sbr.rel (0) target = $region17
    $region16: #{tpu_custom_call.1} parent=1 // pred_region
      %49 = dma.done [#allocation4], 256
    $region17: #{tpu_custom_call.1} parent=1 // pred_fallthru
      _
    %50 = vsyncpa [#allocation3], 1
    %51 = vsyncpa [#allocation4], 1

</llo_original>
